<compile_context>
chip_gen: v7x
topology: tpu7x:2x2x1
jax: 0.10.0
libtpu: 0.0.40
codegen_flags: <defaults>
</compile_context>

<pallas_src>
import functools

import jax
import jax.numpy as jnp
from jax import lax
from jax.experimental import pallas as pl
from jax.experimental.pallas import tpu as pltpu  # noqa: F401  (kept per convention)


def _leaky_relu(x, slope=0.2):
    return jnp.where(x > 0, x, slope * x)


def _proj_w_kernel(z_ref, w1_ref, b1_ref, w2_ref, b2_ref, w3_ref, b3_ref, out_ref):
    """Fused proj_w: Linear -> LeakyReLU(0.2) -> Linear -> LeakyReLU(0.2) -> Linear."""
    h = jnp.dot(z_ref[...], w1_ref[...], preferred_element_type=jnp.float32) + b1_ref[...]
    h = _leaky_relu(h)
    h = jnp.dot(h, w2_ref[...], preferred_element_type=jnp.float32) + b2_ref[...]
    h = _leaky_relu(h)
    out = jnp.dot(h, w3_ref[...], preferred_element_type=jnp.float32) + b3_ref[...]
    out_ref[...] = out.astype(out_ref.dtype)


def _dyn_conv_kernel(tex_ref, w_ref, out_ref, *, K, Wp):
    """Whole-batch dynamic conv of the shared texture in one invocation.

    tex_ref: (Cin, Hp*Wp + K-1)   zero-padded texture, rows flattened (shared).
    w_ref:   (K*K, B*Cout, Cin)   per-tap filter slabs, batch folded into rows.
    out_ref: (B*Cout, H*Wp)       lane-dense output on the padded-width grid.
    """
    rows, L = out_ref.shape
    acc = jnp.zeros((rows, L), jnp.float32)
    for kh in range(K):
        for kw in range(K):
            off = kh * Wp + kw
            tap = tex_ref[:, off:off + L]          # (Cin, L) contiguous lane slice
            acc = acc + jnp.dot(w_ref[kh * K + kw], tap,
                                preferred_element_type=jnp.float32)
    out_ref[...] = acc.astype(out_ref.dtype)       # single lane-dense store


def dynamic_textures_forward(z_face, tex_data, w1, b1, w2, b2, w3, b3,
                             *, d_tex, d_tex_inter, kernel_size=3):
    """DynamicTextures.forward (n_filters=1, no warping/rotation).

    z_face:   (B, d_face)  encoded & flattened face latent.
    tex_data: (1, d_tex_inter, tex_dim, tex_dim) learned texture parameter.
    Returns:  (B, d_tex, tex_dim, tex_dim).
    """
    B = z_face.shape[0]
    K = kernel_size
    KK = K * K
    d_flt = d_tex * d_tex_inter * KK

    # ---- 1) per-sample dynamic filter prediction (fused MLP, one kernel call).
    weights = pl.pallas_call(
        _proj_w_kernel,
        out_shape=jax.ShapeDtypeStruct((B, d_flt), jnp.float32),
    )(z_face, w1, b1, w2, b2, w3, b3)

    # ---- 2) wrapper-side layout plumbing (zero FLOPs).
    # filters -> one (B*Cout, Cin) slab per kernel tap (batch folded into rows).
    flt = weights.reshape(B, d_tex, d_tex_inter, K, K)
    w_taps = jnp.transpose(flt, (3, 4, 0, 1, 2)).reshape(KK, B * d_tex, d_tex_inter)

    # texture: zero-pad spatially, flatten rows so each tap is a contiguous slice.
    _, cin, H, W = tex_data.shape
    pad_l = (K - 1) // 2
    pad_r = K - 1 - pad_l
    Hp, Wp = H + K - 1, W + K - 1
    tex_pad = jnp.pad(tex_data[0], ((0, 0), (pad_l, pad_r), (pad_l, pad_r)))
    L = H * Wp                                     # output length on padded-width grid
    tex_flat = jnp.pad(tex_pad.reshape(cin, Hp * Wp), ((0, 0), (0, K - 1)))

    # ---- 3) whole-batch dynamic conv: ONE kernel invocation (no grid).
    conv_out = pl.pallas_call(
        functools.partial(_dyn_conv_kernel, K=K, Wp=Wp),
        out_shape=jax.ShapeDtypeStruct((B * d_tex, L), jnp.float32),
    )(tex_flat, w_taps)

    # ---- 4) drop the K-1 junk columns per row, restore NCHW.
    return conv_out.reshape(B, d_tex, H, Wp)[:, :, :, :W]


class DynamicTextures:
    """Minimal JAX mirror of the PyTorch module (defaults: n_filters=1, no warping)."""

    def __init__(self, *, tex_features, tex_dim, d_face, d_hid,
                 d_tex_inter=None, kernel_size=3, key):
        if d_tex_inter is None:
            d_tex_inter = tex_features
        self.d_tex = tex_features
        self.d_tex_inter = d_tex_inter
        self.tex_dim = tex_dim
        self.kernel_size = kernel_size
        d_flt = tex_features * d_tex_inter * kernel_size ** 2
        ks = jax.random.split(key, 8)
        self.tex_data = jax.random.normal(
            ks[0], (1, d_tex_inter, tex_dim, tex_dim), jnp.float32)
        s = 0.1
        self.w1 = s * jax.random.normal(ks[1], (d_face, d_hid), jnp.float32)
        self.b1 = s * jax.random.normal(ks[2], (1, d_hid), jnp.float32)
        self.w2 = s * jax.random.normal(ks[3], (d_hid, d_hid), jnp.float32)
        self.b2 = s * jax.random.normal(ks[4], (1, d_hid), jnp.float32)
        self.w3 = s * jax.random.normal(ks[5], (d_hid, d_flt), jnp.float32)
        self.b3 = s * jax.random.normal(ks[6], (1, d_flt), jnp.float32)

    def __call__(self, z_face, rot=None):
        return dynamic_textures_forward(
            z_face, self.tex_data, self.w1, self.b1, self.w2, self.b2,
            self.w3, self.b3, d_tex=self.d_tex, d_tex_inter=self.d_tex_inter,
            kernel_size=self.kernel_size)


def _reference_forward(z_face, tex_data, w1, b1, w2, b2, w3, b3, d_tex, d_tex_inter, K):
    """Pure-JAX reference mirroring the PyTorch forward (n_filters=1)."""
    hi = lax.Precision.HIGHEST
    h = _leaky_relu(jnp.dot(z_face, w1, precision=hi) + b1)
    h = _leaky_relu(jnp.dot(h, w2, precision=hi) + b2)
    wts = jnp.dot(h, w3, precision=hi) + b3
    B = z_face.shape[0]
    flt = wts.reshape(B, d_tex, d_tex_inter, K, K)
    pad = ((K - 1) // 2, K - 1 - (K - 1) // 2)
    outs = [lax.conv_general_dilated(
                tex_data, flt[b], (1, 1), (pad, pad),
                dimension_numbers=("NCHW", "OIHW", "NCHW"), precision=hi)
            for b in range(B)]
    return jnp.concatenate(outs, axis=0)


if __name__ == "__main__":
    key = jax.random.PRNGKey(0)
    k_mod, k_z = jax.random.split(key)

    B = 2
    tex_features = 4     # config.tex_features
    d_tex_inter = 4      # defaults to tex_features
    tex_dim = 16         # config.tex_dim
    K = 3                # kernel_size
    d_face = 32          # flattened face-encoder latent dim (stand-in)
    d_hid = 32           # config.mesh_conv.latent_channels

    module = DynamicTextures(tex_features=tex_features, tex_dim=tex_dim,
                             d_face=d_face, d_hid=d_hid,
                             d_tex_inter=d_tex_inter, kernel_size=K, key=k_mod)
    z_face = jax.random.normal(k_z, (B, d_face), jnp.float32)

    out = jax.block_until_ready(module(z_face))
    assert out.shape == (B, tex_features, tex_dim, tex_dim)
    assert out.dtype == jnp.float32

    ref = jax.block_until_ready(_reference_forward(
        z_face, module.tex_data, module.w1, module.b1, module.w2, module.b2,
        module.w3, module.b3, tex_features, d_tex_inter, K))
    max_err = float(jnp.max(jnp.abs(out - ref)))
    assert jnp.allclose(out, ref, rtol=1e-2, atol=1e-2), f"max abs err {max_err}"

    print("KERNEL_OK")
</pallas_src>

<mosaic_0001>
module attributes {stable_mosaic.version = 11 : i64} {
  func.func @_proj_w_kernel(%arg0: memref<2x32xf32, #tpu.memory_space<vmem>>, %arg1: memref<32x32xf32, #tpu.memory_space<vmem>>, %arg2: memref<1x32xf32, #tpu.memory_space<vmem>>, %arg3: memref<32x32xf32, #tpu.memory_space<vmem>>, %arg4: memref<1x32xf32, #tpu.memory_space<vmem>>, %arg5: memref<32x144xf32, #tpu.memory_space<vmem>>, %arg6: memref<1x144xf32, #tpu.memory_space<vmem>>, %arg7: memref<2x144xf32, #tpu.memory_space<vmem>>) attributes {dimension_semantics = [], scalar_prefetch = 0 : i64, scratch_operands = 0 : i64, tpu.core_type = #tpu.core_type<tc>} {
    %c0 = arith.constant 0 : index
    %c0_0 = arith.constant 0 : index
    %0 = vector.load %arg0[%c0, %c0_0] : memref<2x32xf32, #tpu.memory_space<vmem>>, vector<2x32xf32>
    %c0_1 = arith.constant 0 : index
    %c0_2 = arith.constant 0 : index
    %1 = vector.load %arg1[%c0_1, %c0_2] : memref<32x32xf32, #tpu.memory_space<vmem>>, vector<32x32xf32>
    %cst = arith.constant dense<0.000000e+00> : vector<2x32xf32>
    %2 = tpu.matmul %0, %1, %cst {dimension_numbers = #tpu.dot_dimension_numbers<[1], [0], [0], [1], [0, 0, 1, 1], [], []>} : vector<2x32xf32>, vector<32x32xf32>, vector<2x32xf32> -> vector<2x32xf32>
    %c0_3 = arith.constant 0 : index
    %c0_4 = arith.constant 0 : index
    %3 = vector.load %arg2[%c0_3, %c0_4] : memref<1x32xf32, #tpu.memory_space<vmem>>, vector<1x32xf32>
    %4 = vector.broadcast %3 : vector<1x32xf32> to vector<2x32xf32>
    %5 = arith.addf %2, %4 : vector<2x32xf32>
    %cst_5 = arith.constant 0.000000e+00 : f32
    %6 = vector.broadcast %cst_5 : f32 to vector<2x32xf32>
    %7 = arith.cmpf ogt, %5, %6 : vector<2x32xf32>
    %cst_6 = arith.constant 2.000000e-01 : f32
    %8 = vector.broadcast %cst_6 : f32 to vector<2x32xf32>
    %9 = arith.mulf %8, %5 : vector<2x32xf32>
    %10 = arith.select %7, %5, %9 : vector<2x32xi1>, vector<2x32xf32>
    %c0_7 = arith.constant 0 : index
    %c0_8 = arith.constant 0 : index
    %11 = vector.load %arg3[%c0_7, %c0_8] : memref<32x32xf32, #tpu.memory_space<vmem>>, vector<32x32xf32>
    %cst_9 = arith.constant dense<0.000000e+00> : vector<2x32xf32>
    %12 = tpu.matmul %10, %11, %cst_9 {dimension_numbers = #tpu.dot_dimension_numbers<[1], [0], [0], [1], [0, 0, 1, 1], [], []>} : vector<2x32xf32>, vector<32x32xf32>, vector<2x32xf32> -> vector<2x32xf32>
    %c0_10 = arith.constant 0 : index
    %c0_11 = arith.constant 0 : index
    %13 = vector.load %arg4[%c0_10, %c0_11] : memref<1x32xf32, #tpu.memory_space<vmem>>, vector<1x32xf32>
    %14 = vector.broadcast %13 : vector<1x32xf32> to vector<2x32xf32>
    %15 = arith.addf %12, %14 : vector<2x32xf32>
    %cst_12 = arith.constant 0.000000e+00 : f32
    %16 = vector.broadcast %cst_12 : f32 to vector<2x32xf32>
    %17 = arith.cmpf ogt, %15, %16 : vector<2x32xf32>
    %cst_13 = arith.constant 2.000000e-01 : f32
    %18 = vector.broadcast %cst_13 : f32 to vector<2x32xf32>
    %19 = arith.mulf %18, %15 : vector<2x32xf32>
    %20 = arith.select %17, %15, %19 : vector<2x32xi1>, vector<2x32xf32>
    %c0_14 = arith.constant 0 : index
    %c0_15 = arith.constant 0 : index
    %21 = vector.load %arg5[%c0_14, %c0_15] : memref<32x144xf32, #tpu.memory_space<vmem>>, vector<32x144xf32>
    %cst_16 = arith.constant dense<0.000000e+00> : vector<2x144xf32>
    %22 = tpu.matmul %20, %21, %cst_16 {dimension_numbers = #tpu.dot_dimension_numbers<[1], [0], [0], [1], [0, 0, 1, 1], [], []>} : vector<2x32xf32>, vector<32x144xf32>, vector<2x144xf32> -> vector<2x144xf32>
    %c0_17 = arith.constant 0 : index
    %c0_18 = arith.constant 0 : index
    %23 = vector.load %arg6[%c0_17, %c0_18] : memref<1x144xf32, #tpu.memory_space<vmem>>, vector<1x144xf32>
    %24 = vector.broadcast %23 : vector<1x144xf32> to vector<2x144xf32>
    %25 = arith.addf %22, %24 : vector<2x144xf32>
    %c0_19 = arith.constant 0 : index
    %c0_20 = arith.constant 0 : index
    %26 = vector.load %arg7[%c0_19, %c0_20] : memref<2x144xf32, #tpu.memory_space<vmem>>, vector<2x144xf32>
    tpu.vector_store %arg7[%c0_19, %c0_20], %25 {strides = array<i32>} : memref<2x144xf32, #tpu.memory_space<vmem>>, vector<2x144xf32>,
    return
  }
}

</mosaic_0001>

<llo_original>
// kernel: tpu_custom_call.1
$region0: #{tpu_custom_call.1}
  #allocation0 [shape = 'u32[]', space=smem, size = 0x4, offset = 0x4, fixed_abs, tag = 'smem constant byte address 0x4 - core index']
  #allocation1 [shape = 'u32[144,128]{1,0:T(1,128)}', space=vmem, size = 0x12000, scoped, tag = 'internal scratch']
  %s0 = inlined_call_operand.hbm [shape: f32[2,32], index: 0, kind: input, shape index: {}]
  %s1 = inlined_call_operand.hbm [shape: f32[32,32], index: 1, kind: input, shape index: {}]
  %s2 = inlined_call_operand.vmem [shape: f32[1,32], index: 2, kind: input, shape index: {}]
  %s3 = inlined_call_operand.hbm [shape: f32[32,32], index: 3, kind: input, shape index: {}]
  %s4 = inlined_call_operand.vmem [shape: f32[1,32], index: 4, kind: input, shape index: {}]
  %s5 = inlined_call_operand.hbm [shape: f32[32,144], index: 5, kind: input, shape index: {}]
  %s6 = inlined_call_operand.vmem [shape: f32[1,144], index: 6, kind: input, shape index: {}]
  %s7 = inlined_call_operand.hbm [shape: f32[2,144], index: 7, kind: output, shape index: {}]
  %s8 = sld [smem:[#allocation0]]
  $region54: #{tpu_custom_call.1} parent=0
    _
  %s10 = ssub.s32 1, %s8
  %s11 = scalar_select 0, %s10, %s8
  $region1: #{tpu_custom_call.1} parent=0
    #allocation2 [shape = 'u8[1024]{0}', space=vmem, size = 0x400, scoped, tag = 'input window, operand 0, single buffered']
    #allocation3 [shape = 's32[1]{0}', space=sflag, size = 0x4, scoped, tag = 'scoped memory for tpu_custom_call.1']
    #allocation4 [shape = 's32[1]{0}', space=sflag, size = 0x4, scoped, tag = 'scoped memory for tpu_custom_call.1']
    #allocation5 [shape = 'u8[16384]{0}', space=vmem, size = 0x4000, scoped, tag = 'input window, operand 1, single buffered']
    #allocation6 [shape = 's32[1]{0}', space=sflag, size = 0x4, scoped, tag = 'scoped memory for tpu_custom_call.1']
    #allocation7 [shape = 'u8[16384]{0}', space=vmem, size = 0x4000, scoped, tag = 'input window, operand 3, single buffered']
    #allocation8 [shape = 'u8[32768]{0}', space=vmem, size = 0x8000, scoped, tag = 'input window, operand 5, single buffered']
    #allocation9 [shape = 's32[1]{0}', space=sflag, size = 0x4, scoped, tag = 'scoped memory for tpu_custom_call.1']
    #allocation10 [shape = 'u8[2048]{0}', space=vmem, size = 0x800, scoped, tag = 'output window, operand 0, single buffered']
    %12 = vsyncpa [#allocation3], 0
    %13 = vsyncpa [#allocation6], 0
    %14 = vsyncpa [#allocation9], 0
    %15 = vsyncpa [#allocation4], 0
    // Predicated region
    $region2: #{tpu_custom_call.1} parent=1 // pred_check
      _
    $region3: #{tpu_custom_call.1} parent=1 // pred_check_branch
      %17 = sbr.rel (0) target = $region5
    $region4: #{tpu_custom_call.1} parent=1 // pred_region
      %s19 = ssub.s32 32, 32
      %20 = vsyncadd [#allocation3], %s19
      %s22 = sshll.u32 [#allocation2], 4
      %s23 = int_to_ptr.vmem [resolvable:$true] %s22
      %25 = dma.hbm_to_vmem [thread:$0]  %s0, 32, %s23, [#allocation3]
    $region5: #{tpu_custom_call.1} parent=1 // pred_fallthru
      _
    // Predicated region
    $region6: #{tpu_custom_call.1} parent=1 // pred_check
      _
    $region7: #{tpu_custom_call.1} parent=1 // pred_check_branch
      %27 = sbr.rel (0) target = $region9
    $region8: #{tpu_custom_call.1} parent=1 // pred_region
      %s29 = ssub.s32 512, 512
      %30 = vsyncadd [#allocation6], %s29
      %s31 = sshll.u32 [#allocation5], 4
      %s32 = int_to_ptr.vmem [resolvable:$true] %s31
      %37 = dma.hbm_to_vmem [thread:$0]  %s1, 512, %s32, [#allocation6], 128, 128, 8
    $region9: #{tpu_custom_call.1} parent=1 // pred_fallthru
      _
    // Predicated region
    $region10: #{tpu_custom_call.1} parent=1 // pred_check
      _
    $region11: #{tpu_custom_call.1} parent=1 // pred_check_branch
      %39 = sbr.rel (0) target = $region13
    $region12: #{tpu_custom_call.1} parent=1 // pred_region
      _
    $region13: #{tpu_custom_call.1} parent=1 // pred_fallthru
      _
    // Predicated region
    $region14: #{tpu_custom_call.1} parent=1 // pred_check
      _
    $region15: #{tpu_custom_call.1} parent=1 // pred_check_branch
      %41 = sbr.rel (0) target = $region17
    $region16: #{tpu_custom_call.1} parent=1 // pred_region
      %s43 = ssub.s32 512, 512
      %44 = vsyncadd [#allocation6], %s43
      %s45 = sshll.u32 [#allocation7], 4
      %s46 = int_to_ptr.vmem [resolvable:$true] %s45
      %51 = dma.hbm_to_vmem [thread:$0]  %s3, 512, %s46, [#allocation6], 128, 128, 8
    $region17: #{tpu_custom_call.1} parent=1 // pred_fallthru
      _
    // Predicated region
    $region18: #{tpu_custom_call.1} parent=1 // pred_check
      _
    $region19: #{tpu_custom_call.1} parent=1 // pred_check_branch
      %53 = sbr.rel (0) target = $region21
    $region20: #{tpu_custom_call.1} parent=1 // pred_region
      _
    $region21: #{tpu_custom_call.1} parent=1 // pred_fallthru
      _
    // Predicated region
    $region22: #{tpu_custom_call.1} parent=1 // pred_check
      _
    $region23: #{tpu_custom_call.1} parent=1 // pred_check_branch
      %55 = sbr.rel (0) target = $region25
    $region24: #{tpu_custom_call.1} parent=1 // pred_region
      %s57 = ssub.s32 1024, 1024
      %58 = vsyncadd [#allocation9], %s57
      %s59 = sshll.u32 [#allocation8], 4
      %s60 = int_to_ptr.vmem [resolvable:$true] %s59
      %65 = dma.hbm_to_vmem [thread:$0]  %s5, 1024, %s60, [#allocation9], 256, 256, 16
    $region25: #{tpu_custom_call.1} parent=1 // pred_fallthru
      _
    // Predicated region
    $region26: #{tpu_custom_call.1} parent=1 // pred_check
      _
    $region27: #{tpu_custom_call.1} parent=1 // pred_check_branch
      %67 = sbr.rel (0) target = $region29
    $region28: #{tpu_custom_call.1} parent=1 // pred_region
      _
    $region29: #{tpu_custom_call.1} parent=1 // pred_fallthru
      _
    // Predicated region
    $region30: #{tpu_custom_call.1} parent=1 // pred_check
      _
    $region31: #{tpu_custom_call.1} parent=1 // pred_check_branch
      %69 = sbr.rel (0) target = $region33
    $region32: #{tpu_custom_call.1} parent=1 // pred_region
      %70 = dma.done [#allocation3], 32
    $region33: #{tpu_custom_call.1} parent=1 // pred_fallthru
      _
    // Predicated region
    $region34: #{tpu_custom_call.1} parent=1 // pred_check
      _
    $region35: #{tpu_custom_call.1} parent=1 // pred_check_branch
      %72 = sbr.rel (0) target = $region37
    $region36: #{tpu_custom_call.1} parent=1 // pred_region
      %73 = dma.done [#allocation6], 512
    $region37: #{tpu_custom_call.1} parent=1 // pred_fallthru
      _
    // Predicated region
    $region38: #{tpu_custom_call.1} parent=1 // pred_check
      _
    $region39: #{tpu_custom_call.1} parent=1 // pred_check_branch
      %75 = sbr.rel (0) target = $region41
    $region40: #{tpu_custom_call.1} parent=1 // pred_region
      %76 = dma.done [#allocation6], 512
    $region41: #{tpu_custom_call.1} parent=1 // pred_fallthru
      _
    // Predicated region
    $region42: #{tpu_custom_call.1} parent=1 // pred_check
      _
    $region43: #{tpu_custom_call.1} parent=1 // pred_check_branch
      %78 = sbr.rel (0) target = $region45
    $region44: #{tpu_custom_call.1} parent=1 // pred_region
      %79 = dma.done [#allocation9], 1024
    $region45: #{tpu_custom_call.1} parent=1 // pred_fallthru
      _
    %v80 = vld [vmem:[#allocation2] sm:$0x3]
    %v81 = vld [vmem:[#allocation5] sm:$0xff]
    %v82 = vld [vmem:[#allocation5 + $0x8] sm:$0xff]
    %v83 = vld [vmem:[#allocation5 + $0x10] sm:$0xff]
    %v84 = vld [vmem:[#allocation5 + $0x18] sm:$0xff]
    %v85 = vld [vmem:[%s2] sm:$0x1]
    %v87 = vlaneseq
    %v88 = vshrl.u32 %v87, 7
    %v89 = vsub.s32 0, %v88
    %v90 = vrot.slane %v85, %v89
    %vm92 = vcmask 261120
    %v94 = vsel %vm92, %v80, 0
    %96 = vmatprep.subr.mxu0 0.0
    %97 = vmatpush1.msra.mxu0 %v81
    %98 = vmatprep.subr.mxu0 0.0
    %99 = vmatpush1.msra.mxu0 %v82
    %100 = vmatprep.subr.mxu0 0.0
    %101 = vmatpush1.msra.mxu0 %v83
    %102 = vmatprep.subr.mxu0 0.0
    %103 = vmatpush1.msra.mxu0 %v84
    %104 = vmatprep.subr.mxu0 0.0
    %105 = vmatpush1.msra.mxu0 0.0
    %106 = vmatprep.subr.mxu0 0.0
    %107 = vmatpush1.msra.mxu0 0.0
    %108 = vmatprep.subr.mxu0 0.0
    %109 = vmatpush1.msra.mxu0 0.0
    %110 = vmatprep.subr.mxu0 0.0
    %111 = vmatpush1.msra.mxu0 0.0
    %112 = vmatprep.subr.mxu0 0.0
    %113 = vmatpush1.msra.mxu0 0.0
    %114 = vmatprep.subr.mxu0 0.0
    %115 = vmatpush1.msra.mxu0 0.0
    %116 = vmatprep.subr.mxu0 0.0
    %117 = vmatpush1.msra.mxu0 0.0
    %118 = vmatprep.subr.mxu0 0.0
    %119 = vmatpush1.msra.mxu0 0.0
    %120 = vmatprep.subr.mxu0 0.0
    %121 = vmatpush1.msra.mxu0 0.0
    %122 = vmatprep.subr.mxu0 0.0
    %123 = vmatpush1.msra.mxu0 0.0
    %124 = vmatprep.subr.mxu0 0.0
    %125 = vmatpush1.msra.mxu0 0.0
    %126 = vmatprep.subr.mxu0 0.0
    %127 = vmatpush1.msra.mxu0 0.0
    %128 = vmatprep.subr.mxu0 0.0
    %129 = vmatpush1.msra.mxu0 0.0
    %130 = vmatprep.subr.mxu0 0.0
    %131 = vmatpush1.msra.mxu0 0.0
    %132 = vmatprep.subr.mxu0 0.0
    %133 = vmatpush1.msra.mxu0 0.0
    %134 = vmatprep.subr.mxu0 0.0
    %135 = vmatpush1.msra.mxu0 0.0
    %136 = vmatprep.subr.mxu0 0.0
    %137 = vmatpush1.msra.mxu0 0.0
    %138 = vmatprep.subr.mxu0 0.0
    %139 = vmatpush1.msra.mxu0 0.0
    %140 = vmatprep.subr.mxu0 0.0
    %141 = vmatpush1.msra.mxu0 0.0
    %142 = vmatprep.subr.mxu0 0.0
    %143 = vmatpush1.msra.mxu0 0.0
    %144 = vmatprep.subr.mxu0 0.0
    %145 = vmatpush1.msra.mxu0 0.0
    %146 = vmatprep.subr.mxu0 0.0
    %147 = vmatpush1.msra.mxu0 0.0
    %148 = vmatprep.subr.mxu0 0.0
    %149 = vmatpush1.msra.mxu0 0.0
    %150 = vmatprep.subr.mxu0 0.0
    %151 = vmatpush1.msra.mxu0 0.0
    %152 = vmatprep.subr.mxu0 0.0
    %153 = vmatpush1.msra.mxu0 0.0
    %154 = vmatprep.subr.mxu0 0.0
    %155 = vmatpush1.msra.mxu0 0.0
    %156 = vmatprep.subr.mxu0 0.0
    %157 = vmatpush1.msra.mxu0 0.0
    %158 = vmatprep.subr.mxu0 0.0
    %159 = vmatpush1.msra.mxu0 0.0
    %160 = vmatprep.mubr.f32.mxu0 0.0
    %161 = vmatmul.mubr.f32.gmra.mrb[0].mxu0 %v94
    %v162 = vpop.f32.mrb[0].mxu0
    %v163 = vadd.f32 %v90, %v162
    %v164 = vpop.f32.mrb[0].mxu0
    %165 = vdwg.mxu0
    %vm166 = vcmp.gt.f32.partialorder %v163, 0.0
    %v167 = vmul.f32 %v163, 0.2
    %v168 = vsel %vm166, %v163, %v167
    %v169 = vld [vmem:[#allocation7] sm:$0xff]
    %v170 = vld [vmem:[#allocation7 + $0x8] sm:$0xff]
    %v171 = vld [vmem:[#allocation7 + $0x10] sm:$0xff]
    %v172 = vld [vmem:[#allocation7 + $0x18] sm:$0xff]
    %v173 = vld [vmem:[%s4] sm:$0x1]
    %v175 = vlaneseq
    %v176 = vshrl.u32 %v175, 7
    %v177 = vsub.s32 0, %v176
    %v178 = vrot.slane %v173, %v177
    %v181 = vsel %vm92, %v168, 0
    %183 = vmatprep.subr.mxu0 0.0
    %184 = vmatpush1.msra.mxu0 %v169
    %185 = vmatprep.subr.mxu0 0.0
    %186 = vmatpush1.msra.mxu0 %v170
    %187 = vmatprep.subr.mxu0 0.0
    %188 = vmatpush1.msra.mxu0 %v171
    %189 = vmatprep.subr.mxu0 0.0
    %190 = vmatpush1.msra.mxu0 %v172
    %191 = vmatprep.subr.mxu0 0.0
    %192 = vmatpush1.msra.mxu0 0.0
    %193 = vmatprep.subr.mxu0 0.0
    %194 = vmatpush1.msra.mxu0 0.0
    %195 = vmatprep.subr.mxu0 0.0
    %196 = vmatpush1.msra.mxu0 0.0
    %197 = vmatprep.subr.mxu0 0.0
    %198 = vmatpush1.msra.mxu0 0.0
    %199 = vmatprep.subr.mxu0 0.0
    %200 = vmatpush1.msra.mxu0 0.0
    %201 = vmatprep.subr.mxu0 0.0
    %202 = vmatpush1.msra.mxu0 0.0
    %203 = vmatprep.subr.mxu0 0.0
    %204 = vmatpush1.msra.mxu0 0.0
    %205 = vmatprep.subr.mxu0 0.0
    %206 = vmatpush1.msra.mxu0 0.0
    %207 = vmatprep.subr.mxu0 0.0
    %208 = vmatpush1.msra.mxu0 0.0
    %209 = vmatprep.subr.mxu0 0.0
    %210 = vmatpush1.msra.mxu0 0.0
    %211 = vmatprep.subr.mxu0 0.0
    %212 = vmatpush1.msra.mxu0 0.0
    %213 = vmatprep.subr.mxu0 0.0
    %214 = vmatpush1.msra.mxu0 0.0
    %215 = vmatprep.subr.mxu0 0.0
    %216 = vmatpush1.msra.mxu0 0.0
    %217 = vmatprep.subr.mxu0 0.0
    %218 = vmatpush1.msra.mxu0 0.0
    %219 = vmatprep.subr.mxu0 0.0
    %220 = vmatpush1.msra.mxu0 0.0
    %221 = vmatprep.subr.mxu0 0.0
    %222 = vmatpush1.msra.mxu0 0.0
    %223 = vmatprep.subr.mxu0 0.0
    %224 = vmatpush1.msra.mxu0 0.0
    %225 = vmatprep.subr.mxu0 0.0
    %226 = vmatpush1.msra.mxu0 0.0
    %227 = vmatprep.subr.mxu0 0.0
    %228 = vmatpush1.msra.mxu0 0.0
    %229 = vmatprep.subr.mxu0 0.0
    %230 = vmatpush1.msra.mxu0 0.0
    %231 = vmatprep.subr.mxu0 0.0
    %232 = vmatpush1.msra.mxu0 0.0
    %233 = vmatprep.subr.mxu0 0.0
    %234 = vmatpush1.msra.mxu0 0.0
    %235 = vmatprep.subr.mxu0 0.0
    %236 = vmatpush1.msra.mxu0 0.0
    %237 = vmatprep.subr.mxu0 0.0
    %238 = vmatpush1.msra.mxu0 0.0
    %239 = vmatprep.subr.mxu0 0.0
    %240 = vmatpush1.msra.mxu0 0.0
    %241 = vmatprep.subr.mxu0 0.0
    %242 = vmatpush1.msra.mxu0 0.0
    %243 = vmatprep.subr.mxu0 0.0
    %244 = vmatpush1.msra.mxu0 0.0
    %245 = vmatprep.subr.mxu0 0.0
    %246 = vmatpush1.msra.mxu0 0.0
    %247 = vmatprep.mubr.f32.mxu0 0.0
    %248 = vmatmul.mubr.f32.gmra.mrb[0].mxu0 %v181
    %v249 = vpop.f32.mrb[0].mxu0
    %v250 = vadd.f32 %v178, %v249
    %v251 = vpop.f32.mrb[0].mxu0
    %252 = vdwg.mxu0
    %vm253 = vcmp.gt.f32.partialorder %v250, 0.0
    %v254 = vmul.f32 %v250, 0.2
    %v255 = vsel %vm253, %v250, %v254
    %v256 = vld [vmem:[#allocation8] sm:$0xff]
    %v257 = vld [vmem:[#allocation8 + $0x8] sm:$0xff]
    %v258 = vld [vmem:[#allocation8 + $0x10] sm:$0xff]
    %v259 = vld [vmem:[#allocation8 + $0x18] sm:$0xff]
    %v260 = vld [vmem:[#allocation8 + $0x20] sm:$0xff]
    %v261 = vld [vmem:[#allocation8 + $0x28] sm:$0xff]
    %v262 = vld [vmem:[#allocation8 + $0x30] sm:$0xff]
    %v263 = vld [vmem:[#allocation8 + $0x38] sm:$0xff]
    %v264 = vld [vmem:[%s6] sm:$0x3]
    %v266 = vlaneseq
    %v267 = vshrl.u32 %v266, 7
    %v268 = vsub.s32 0, %v267
    %v269 = vrot.slane %v264, %v268
    %v270 = vlaneseq
    %v271 = vshrl.u32 %v270, 7
    %v272 = vsub.s32 1, %v271
    %v273 = vrot.slane %v264, %v272
    %v277 = vsel %vm92, %v255, 0
    %279 = vmatprep.subr.mxu0 %v257
    %280 = vmatpush1.msra.mxu0 %v256
    %281 = vmatprep.subr.mxu0 %v259
    %282 = vmatpush1.msra.mxu0 %v258
    %283 = vmatprep.subr.mxu0 %v261
    %284 = vmatpush1.msra.mxu0 %v260
    %285 = vmatprep.subr.mxu0 %v263
    %286 = vmatpush1.msra.mxu0 %v262
    %287 = vmatprep.subr.mxu0 0.0
    %288 = vmatpush1.msra.mxu0 0.0
    %289 = vmatprep.subr.mxu0 0.0
    %290 = vmatpush1.msra.mxu0 0.0
    %291 = vmatprep.subr.mxu0 0.0
    %292 = vmatpush1.msra.mxu0 0.0
    %293 = vmatprep.subr.mxu0 0.0
    %294 = vmatpush1.msra.mxu0 0.0
    %295 = vmatprep.subr.mxu0 0.0
    %296 = vmatpush1.msra.mxu0 0.0
    %297 = vmatprep.subr.mxu0 0.0
    %298 = vmatpush1.msra.mxu0 0.0
    %299 = vmatprep.subr.mxu0 0.0
    %300 = vmatpush1.msra.mxu0 0.0
    %301 = vmatprep.subr.mxu0 0.0
    %302 = vmatpush1.msra.mxu0 0.0
    %303 = vmatprep.subr.mxu0 0.0
    %304 = vmatpush1.msra.mxu0 0.0
    %305 = vmatprep.subr.mxu0 0.0
    %306 = vmatpush1.msra.mxu0 0.0
    %307 = vmatprep.subr.mxu0 0.0
    %308 = vmatpush1.msra.mxu0 0.0
    %309 = vmatprep.subr.mxu0 0.0
    %310 = vmatpush1.msra.mxu0 0.0
    %311 = vmatprep.subr.mxu0 0.0
    %312 = vmatpush1.msra.mxu0 0.0
    %313 = vmatprep.subr.mxu0 0.0
    %314 = vmatpush1.msra.mxu0 0.0
    %315 = vmatprep.subr.mxu0 0.0
    %316 = vmatpush1.msra.mxu0 0.0
    %317 = vmatprep.subr.mxu0 0.0
    %318 = vmatpush1.msra.mxu0 0.0
    %319 = vmatprep.subr.mxu0 0.0
    %320 = vmatpush1.msra.mxu0 0.0
    %321 = vmatprep.subr.mxu0 0.0
    %322 = vmatpush1.msra.mxu0 0.0
    %323 = vmatprep.subr.mxu0 0.0
    %324 = vmatpush1.msra.mxu0 0.0
    %325 = vmatprep.subr.mxu0 0.0
    %326 = vmatpush1.msra.mxu0 0.0
    %327 = vmatprep.subr.mxu0 0.0
    %328 = vmatpush1.msra.mxu0 0.0
    %329 = vmatprep.subr.mxu0 0.0
    %330 = vmatpush1.msra.mxu0 0.0
    %331 = vmatprep.subr.mxu0 0.0
    %332 = vmatpush1.msra.mxu0 0.0
    %333 = vmatprep.subr.mxu0 0.0
    %334 = vmatpush1.msra.mxu0 0.0
    %335 = vmatprep.subr.mxu0 0.0
    %336 = vmatpush1.msra.mxu0 0.0
    %337 = vmatprep.subr.mxu0 0.0
    %338 = vmatpush1.msra.mxu0 0.0
    %339 = vmatprep.subr.mxu0 0.0
    %340 = vmatpush1.msra.mxu0 0.0
    %341 = vmatprep.subr.mxu0 0.0
    %342 = vmatpush1.msra.mxu0 0.0
    %343 = vmatprep.mubr.f32.mxu0 0.0
    %344 = vmatmul.mubr.f32.gmra.mrb[0].mxu0 %v277
    %v345 = vpop.f32.mrb[0].mxu0
    %v346 = vadd.f32 %v269, %v345
    %v347 = vpop.f32.mrb[0].mxu0
    %v348 = vadd.f32 %v273, %v347
    %349 = vdwg.mxu0
    %v352 = vcombine.low %v346, %v348
    %v354 = vunpack.c.l.s4 1983009808
    %v355 = vunpack.c.0.s8 %v354
    %v356 = vlaneseq
    %v357 = vshrl.u32 %v356, 7
    %v358 = vsub.s32 %v355, %v357
    %v359 = vrot.slane %v352, %v358
    %vm361 = vcmask 1041408
    %vm362 = vcmask 125954
    %vm363 = vmor %vm362, %vm361
    %364 = vst.msk [vmem:[#allocation10] sm:$0xf] %vm363, %v359
    // Predicated region
    $region46: #{tpu_custom_call.1} parent=1 // pred_check
      _
    $region47: #{tpu_custom_call.1} parent=1 // pred_check_branch
      %366 = sbr.rel (0) target = $region49
    $region48: #{tpu_custom_call.1} parent=1 // pred_region
      %s368 = ssub.s32 64, 64
      %369 = vsyncadd [#allocation4], %s368
      %s371 = sshll.u32 [#allocation10], 4
      %s372 = int_to_ptr.vmem [resolvable:$true] %s371
      %374 = dma.vmem_to_hbm [thread:$0]  %s372, 64, %s7, [#allocation4]
    $region49: #{tpu_custom_call.1} parent=1 // pred_fallthru
      _
    // Predicated region
    $region50: #{tpu_custom_call.1} parent=1 // pred_check
      _
    $region51: #{tpu_custom_call.1} parent=1 // pred_check_branch
      %376 = sbr.rel (0) target = $region53
    $region52: #{tpu_custom_call.1} parent=1 // pred_region
      %377 = dma.done [#allocation4], 64
    $region53: #{tpu_custom_call.1} parent=1 // pred_fallthru
      _
    %378 = vsyncpa [#allocation3], 1
    %379 = vsyncpa [#allocation6], 1
    %380 = vsyncpa [#allocation9], 1
    %381 = vsyncpa [#allocation4], 1

</llo_original>
